<compile_context>
chip_gen: v7x
topology: tpu7x:2x2x1
jax: 0.10.0
libtpu: 0.0.40
codegen_flags: <defaults>
</compile_context>

<pallas_src>
import functools

import jax
import jax.numpy as jnp
from jax import lax
from jax.experimental import pallas as pl
from jax.experimental.pallas import tpu as pltpu


def lstm_predictor_kernel(x_ref, slab_ref, o_ref, hs_ref):
    Bt, S, _ = x_ref.shape
    H = hs_ref.shape[2]
    G = 4 * H  # packed gate width == padded output lane width (128 for H=32)

    # Static slices of the packed weight slab (free).
    w_x0 = slab_ref[0:1, :].reshape(1, 1, G)      # W_ih^T row for input feat 0
    w_x1 = slab_ref[1:2, :].reshape(1, 1, G)      # W_ih^T row for input feat 1
    bias = slab_ref[2:3, :].reshape(1, 1, G)      # b_ih + b_hh  (order i,f,o,g)
    w_h = slab_ref[3:3 + H, :]                    # (H, 4H)  W_hh^T
    w_o = slab_ref[3 + H:3 + 2 * H, :]            # (H, 4H)  W_out^T zero-padded
    b_o = slab_ref[3 + 2 * H:4 + 2 * H, :]        # (1, 4H)  b_out  zero-padded

    # Hoisted input projection on the VPU: two broadcast FMAs + folded bias.
    x = x_ref[...]                                              # (Bt, S, 2)
    x_proj = x[:, :, 0:1] * w_x0 + x[:, :, 1:2] * w_x1 + bias   # (Bt, S, 4H)

    # ---- t == 0 fast path: h0 = c0 = 0 -> no recurrent matmul, no f*c term.
    g0 = x_proj[:, 0, :]                                        # (Bt, 4H)
    ifo = jax.nn.sigmoid(g0[:, :3 * H])
    gg = jnp.tanh(g0[:, 3 * H:])
    c = ifo[:, 0 * H:1 * H] * gg
    h = ifo[:, 2 * H:3 * H] * jnp.tanh(c)
    hs_ref[:, 0:1, :] = h[:, None, :]

    # ---- remaining steps, fully unrolled (S is compile-time static & small).
    for t in range(1, S):
        gates = x_proj[:, t, :] + jnp.dot(
            h, w_h, preferred_element_type=jnp.float32)         # (Bt, 4H)
        ifo = jax.nn.sigmoid(gates[:, :3 * H])                  # sigmoid over i|f|o
        gg = jnp.tanh(gates[:, 3 * H:])                         # tanh over g
        c = ifo[:, 1 * H:2 * H] * c + ifo[:, 0 * H:1 * H] * gg
        h = ifo[:, 2 * H:3 * H] * jnp.tanh(c)
        hs_ref[:, t:t + 1, :] = h[:, None, :]

    # ---- hoisted, lane-dense output projection: one matmul, one full store.
    hs_all = hs_ref[...].reshape(Bt * S, H)
    out = jnp.dot(hs_all, w_o, preferred_element_type=jnp.float32) + b_o
    o_ref[...] = out.reshape(Bt, S, G)


def _reorder_gate_rows(w, H):
    """PyTorch gate row order (i, f, g, o) -> kernel order (i, f, o, g)."""
    return jnp.concatenate([w[:2 * H], w[3 * H:4 * H], w[2 * H:3 * H]], axis=0)


def prepare_params(params):
    """One-time weight packing (out of the per-call path).

    Returns a single (4 + 2H, 4H) float32 slab holding, row-wise:
      [ W_ih^T (2) | b_ih+b_hh (1) | W_hh^T (H) | W_out^T zero-padded (H) |
        b_out zero-padded (1) ]   with gates permuted to (i, f, o, g).
    """
    H = params["hidden_dim"]
    G = 4 * H
    wih_t = _reorder_gate_rows(params["w_ih"], H).T                 # (2, 4H)
    whh_t = _reorder_gate_rows(params["w_hh"], H).T                 # (H, 4H)
    b = _reorder_gate_rows(params["b_ih"] + params["b_hh"], H).reshape(1, G)
    w_out_pad = jnp.zeros((H, G), jnp.float32).at[:, :2].set(params["w_out"].T)
    b_out_pad = jnp.zeros((1, G), jnp.float32).at[:, :2].set(
        params["b_out"].reshape(1, 2))
    slab = jnp.concatenate([wih_t, b, whh_t, w_out_pad, b_out_pad], axis=0)
    return slab.astype(jnp.float32)


def _call_kernel(x_b, slab, block_b):
    B, S, _ = x_b.shape
    R, G = slab.shape
    H = (R - 4) // 2
    out = pl.pallas_call(
        lstm_predictor_kernel,
        out_shape=jax.ShapeDtypeStruct((B, S, G), jnp.float32),
        grid_spec=pltpu.PrefetchScalarGridSpec(
            num_scalar_prefetch=0,
            grid=(B // block_b,),
            in_specs=[pl.BlockSpec((block_b, S, 2), lambda g: (g, 0, 0)),
                      pl.BlockSpec((R, G), lambda g: (0, 0))],
            out_specs=pl.BlockSpec((block_b, S, G), lambda g: (g, 0, 0)),
            scratch_shapes=[pltpu.VMEM((block_b, S, H), jnp.float32)]),
        compiler_params=pltpu.CompilerParams(
            dimension_semantics=("parallel",)),
    )(x_b, slab)
    return out[:, :, :2]  # drop lane padding (fused under jit)


@jax.jit
def lstm_predictor_forward(note_seq, slab):
    """Module-equivalent forward: note_seq (S, 2) f32 -> note_space (S, 2)."""
    return _call_kernel(note_seq[None].astype(jnp.float32), slab, block_b=1)[0]


@functools.partial(jax.jit, static_argnames=("block_b",))
def lstm_predictor_forward_batched(note_seqs, slab, block_b=None):
    """Batched throughput path: note_seqs (B, S, 2) -> (B, S, 2).

    Each sequence gets its own zero (h0, c0); sequences ride the M dimension
    of the recurrence matmul and batch groups shard across TensorCores."""
    B = note_seqs.shape[0]
    bt = B if block_b is None else block_b
    assert B % bt == 0
    return _call_kernel(note_seqs.astype(jnp.float32), slab, block_b=bt)


def init_params(hidden_dim, key):
    """Deterministic init mimicking PyTorch's U(-1/sqrt(H), 1/sqrt(H))."""
    H = hidden_dim
    k = 1.0 / jnp.sqrt(jnp.float32(H))
    keys = jax.random.split(key, 6)
    u = lambda kk, shape: jax.random.uniform(kk, shape, jnp.float32, -k, k)
    return {
        "hidden_dim": H,
        "w_ih": u(keys[0], (4 * H, 2)),
        "w_hh": u(keys[1], (4 * H, H)),
        "b_ih": u(keys[2], (4 * H,)),
        "b_hh": u(keys[3], (4 * H,)),
        "w_out": u(keys[4], (2, H)),
        "b_out": u(keys[5], (2,)),
    }


def reference_forward(note_seq, params):
    """Pure-JAX reference of the same forward pass (PyTorch i,f,g,o order)."""
    H = params["hidden_dim"]
    w_ih, w_hh = params["w_ih"], params["w_hh"]
    b = params["b_ih"] + params["b_hh"]

    def step(carry, x_t):
        h, c = carry
        gates = x_t @ w_ih.T + h @ w_hh.T + b
        i = jax.nn.sigmoid(gates[0 * H:1 * H])
        f = jax.nn.sigmoid(gates[1 * H:2 * H])
        g = jnp.tanh(gates[2 * H:3 * H])
        o = jax.nn.sigmoid(gates[3 * H:4 * H])
        c = f * c + i * g
        h = o * jnp.tanh(c)
        return (h, c), h

    h0 = jnp.zeros((H,), jnp.float32)
    c0 = jnp.zeros((H,), jnp.float32)
    _, hs = lax.scan(step, (h0, c0), note_seq)
    return hs @ params["w_out"].T + params["b_out"]


if __name__ == "__main__":
    SEQ = 8
    HIDDEN = 32

    key = jax.random.PRNGKey(0)
    k_params, k_x, k_xb = jax.random.split(key, 3)
    params = init_params(HIDDEN, k_params)
    slab = prepare_params(params)  # one-time packing, outside the call path

    # Module-equivalent single-sequence forward (batch = 1, like the nn.Module).
    note_seq = jax.random.normal(k_x, (SEQ, 2), jnp.float32)
    out = jax.block_until_ready(lstm_predictor_forward(note_seq, slab))
    ref = reference_forward(note_seq, params)
    assert out.shape == (SEQ, 2)
    assert jnp.allclose(out, ref, atol=1e-3, rtol=1e-3), (out, ref)

    # Batched throughput path (4 sequences, 2 per grid step -> 2 TC groups).
    note_seqs = jax.random.normal(k_xb, (4, SEQ, 2), jnp.float32)
    out_b = jax.block_until_ready(
        lstm_predictor_forward_batched(note_seqs, slab, block_b=2))
    ref_b = jax.vmap(lambda x: reference_forward(x, params))(note_seqs)
    assert out_b.shape == (4, SEQ, 2)
    assert jnp.allclose(out_b, ref_b, atol=1e-3, rtol=1e-3), (out_b, ref_b)

    print("KERNEL_OK")
</pallas_src>

<mosaic_0001>
module attributes {stable_mosaic.version = 11 : i64} {
  func.func @lstm_predictor_kernel(%arg0: i32, %arg1: memref<1x8x2xf32, #tpu.memory_space<vmem>>, %arg2: memref<68x128xf32, #tpu.memory_space<vmem>>, %arg3: memref<1x8x128xf32, #tpu.memory_space<vmem>>, %arg4: memref<1x8x32xf32, #tpu.memory_space<vmem>>) attributes {dimension_semantics = [#tpu.dimension_semantics<parallel>], iteration_bounds = array<i64: 1>, scalar_prefetch = 0 : i64, scratch_operands = 1 : i64, tpu.core_type = #tpu.core_type<tc>, window_params = [{transform_indices = @transform_0, window_bounds = array<i64: 1, 8, 2>}, {pipeline_mode = #tpu.pipeline_mode<synchronous>, transform_indices = @transform_1, window_bounds = array<i64: 68, 128>}, {transform_indices = @transform_2, window_bounds = array<i64: 1, 8, 128>}]} {
    %c0 = arith.constant 0 : index
    %c0_0 = arith.constant 0 : index
    %0 = vector.load %arg2[%c0, %c0_0] : memref<68x128xf32, #tpu.memory_space<vmem>>, vector<1x128xf32>
    %1 = vector.shape_cast %0 : vector<1x128xf32> to vector<1x1x128xf32>
    %c1 = arith.constant 1 : index
    %c0_1 = arith.constant 0 : index
    %2 = vector.load %arg2[%c1, %c0_1] : memref<68x128xf32, #tpu.memory_space<vmem>>, vector<1x128xf32>
    %3 = vector.shape_cast %2 : vector<1x128xf32> to vector<1x1x128xf32>
    %c2 = arith.constant 2 : index
    %c0_2 = arith.constant 0 : index
    %4 = vector.load %arg2[%c2, %c0_2] : memref<68x128xf32, #tpu.memory_space<vmem>>, vector<1x128xf32>
    %5 = vector.shape_cast %4 : vector<1x128xf32> to vector<1x1x128xf32>
    %c3 = arith.constant 3 : index
    %c0_3 = arith.constant 0 : index
    %6 = vector.load %arg2[%c3, %c0_3] : memref<68x128xf32, #tpu.memory_space<vmem>>, vector<32x128xf32>
    %c35 = arith.constant 35 : index
    %c0_4 = arith.constant 0 : index
    %7 = vector.load %arg2[%c35, %c0_4] : memref<68x128xf32, #tpu.memory_space<vmem>>, vector<32x128xf32>
    %c67 = arith.constant 67 : index
    %c0_5 = arith.constant 0 : index
    %8 = vector.load %arg2[%c67, %c0_5] : memref<68x128xf32, #tpu.memory_space<vmem>>, vector<1x128xf32>
    %c0_6 = arith.constant 0 : index
    %c0_7 = arith.constant 0 : index
    %c0_8 = arith.constant 0 : index
    %9 = vector.load %arg1[%c0_6, %c0_7, %c0_8] : memref<1x8x2xf32, #tpu.memory_space<vmem>>, vector<1x8x2xf32>
    %10 = vector.extract_strided_slice %9 {offsets = [0, 0, 0], sizes = [1, 8, 1], strides = [1, 1, 1]} : vector<1x8x2xf32> to vector<1x8x1xf32>
    %11 = vector.broadcast %10 : vector<1x8x1xf32> to vector<1x8x128xf32>
    %12 = vector.broadcast %1 : vector<1x1x128xf32> to vector<1x8x128xf32>
    %13 = arith.mulf %11, %12 : vector<1x8x128xf32>
    %14 = vector.extract_strided_slice %9 {offsets = [0, 0, 1], sizes = [1, 8, 1], strides = [1, 1, 1]} : vector<1x8x2xf32> to vector<1x8x1xf32>
    %15 = vector.broadcast %14 : vector<1x8x1xf32> to vector<1x8x128xf32>
    %16 = vector.broadcast %3 : vector<1x1x128xf32> to vector<1x8x128xf32>
    %17 = arith.mulf %15, %16 : vector<1x8x128xf32>
    %18 = arith.addf %13, %17 : vector<1x8x128xf32>
    %19 = vector.broadcast %5 : vector<1x1x128xf32> to vector<1x8x128xf32>
    %20 = arith.addf %18, %19 : vector<1x8x128xf32>
    %21 = vector.extract_strided_slice %20 {offsets = [0, 0, 0], sizes = [1, 1, 128], strides = [1, 1, 1]} : vector<1x8x128xf32> to vector<1x1x128xf32>
    %22 = vector.shape_cast %21 : vector<1x1x128xf32> to vector<1x128xf32>
    %23 = vector.extract_strided_slice %22 {offsets = [0, 0], sizes = [1, 96], strides = [1, 1]} : vector<1x128xf32> to vector<1x96xf32>
    %24 = arith.negf %23 : vector<1x96xf32>
    %25 = math.exp %24 : vector<1x96xf32>
    %cst = arith.constant 1.000000e+00 : f32
    %26 = vector.broadcast %cst : f32 to vector<1x96xf32>
    %27 = arith.addf %26, %25 : vector<1x96xf32>
    %28 = arith.divf %26, %27 : vector<1x96xf32>
    %29 = vector.extract_strided_slice %22 {offsets = [0, 96], sizes = [1, 32], strides = [1, 1]} : vector<1x128xf32> to vector<1x32xf32>
    %30 = math.tanh %29 : vector<1x32xf32>
    %31 = vector.extract_strided_slice %28 {offsets = [0, 0], sizes = [1, 32], strides = [1, 1]} : vector<1x96xf32> to vector<1x32xf32>
    %32 = arith.mulf %31, %30 : vector<1x32xf32>
    %33 = vector.extract_strided_slice %28 {offsets = [0, 64], sizes = [1, 32], strides = [1, 1]} : vector<1x96xf32> to vector<1x32xf32>
    %34 = math.tanh %32 : vector<1x32xf32>
    %35 = arith.mulf %33, %34 : vector<1x32xf32>
    %36 = vector.shape_cast %35 : vector<1x32xf32> to vector<1x1x32xf32>
    %c0_9 = arith.constant 0 : index
    %c0_10 = arith.constant 0 : index
    %c0_11 = arith.constant 0 : index
    %37 = vector.load %arg4[%c0_9, %c0_10, %c0_11] : memref<1x8x32xf32, #tpu.memory_space<vmem>>, vector<1x1x32xf32>
    tpu.vector_store %arg4[%c0_9, %c0_10, %c0_11], %36 {strides = array<i32>} : memref<1x8x32xf32, #tpu.memory_space<vmem>>, vector<1x1x32xf32>,
    %38 = vector.extract_strided_slice %20 {offsets = [0, 1, 0], sizes = [1, 1, 128], strides = [1, 1, 1]} : vector<1x8x128xf32> to vector<1x1x128xf32>
    %39 = vector.shape_cast %38 : vector<1x1x128xf32> to vector<1x128xf32>
    %cst_12 = arith.constant dense<0.000000e+00> : vector<1x128xf32>
    %40 = tpu.matmul %35, %6, %cst_12 {dimension_numbers = #tpu.dot_dimension_numbers<[1], [0], [0], [1], [0, 0, 1, 1], [], []>} : vector<1x32xf32>, vector<32x128xf32>, vector<1x128xf32> -> vector<1x128xf32>
    %41 = arith.addf %39, %40 : vector<1x128xf32>
    %42 = vector.extract_strided_slice %41 {offsets = [0, 0], sizes = [1, 96], strides = [1, 1]} : vector<1x128xf32> to vector<1x96xf32>
    %43 = arith.negf %42 : vector<1x96xf32>
    %44 = math.exp %43 : vector<1x96xf32>
    %cst_13 = arith.constant 1.000000e+00 : f32
    %45 = vector.broadcast %cst_13 : f32 to vector<1x96xf32>
    %46 = arith.addf %45, %44 : vector<1x96xf32>
    %47 = arith.divf %45, %46 : vector<1x96xf32>
    %48 = vector.extract_strided_slice %41 {offsets = [0, 96], sizes = [1, 32], strides = [1, 1]} : vector<1x128xf32> to vector<1x32xf32>
    %49 = math.tanh %48 : vector<1x32xf32>
    %50 = vector.extract_strided_slice %47 {offsets = [0, 32], sizes = [1, 32], strides = [1, 1]} : vector<1x96xf32> to vector<1x32xf32>
    %51 = arith.mulf %50, %32 : vector<1x32xf32>
    %52 = vector.extract_strided_slice %47 {offsets = [0, 0], sizes = [1, 32], strides = [1, 1]} : vector<1x96xf32> to vector<1x32xf32>
    %53 = arith.mulf %52, %49 : vector<1x32xf32>
    %54 = arith.addf %51, %53 : vector<1x32xf32>
    %55 = vector.extract_strided_slice %47 {offsets = [0, 64], sizes = [1, 32], strides = [1, 1]} : vector<1x96xf32> to vector<1x32xf32>
    %56 = math.tanh %54 : vector<1x32xf32>
    %57 = arith.mulf %55, %56 : vector<1x32xf32>
    %58 = vector.shape_cast %57 : vector<1x32xf32> to vector<1x1x32xf32>
    %c0_14 = arith.constant 0 : index
    %c1_15 = arith.constant 1 : index
    %c0_16 = arith.constant 0 : index
    %59 = vector.load %arg4[%c0_14, %c1_15, %c0_16] : memref<1x8x32xf32, #tpu.memory_space<vmem>>, vector<1x1x32xf32>
    tpu.vector_store %arg4[%c0_14, %c1_15, %c0_16], %58 {strides = array<i32>} : memref<1x8x32xf32, #tpu.memory_space<vmem>>, vector<1x1x32xf32>,
    %60 = vector.extract_strided_slice %20 {offsets = [0, 2, 0], sizes = [1, 1, 128], strides = [1, 1, 1]} : vector<1x8x128xf32> to vector<1x1x128xf32>
    %61 = vector.shape_cast %60 : vector<1x1x128xf32> to vector<1x128xf32>
    %cst_17 = arith.constant dense<0.000000e+00> : vector<1x128xf32>
    %62 = tpu.matmul %57, %6, %cst_17 {dimension_numbers = #tpu.dot_dimension_numbers<[1], [0], [0], [1], [0, 0, 1, 1], [], []>} : vector<1x32xf32>, vector<32x128xf32>, vector<1x128xf32> -> vector<1x128xf32>
    %63 = arith.addf %61, %62 : vector<1x128xf32>
    %64 = vector.extract_strided_slice %63 {offsets = [0, 0], sizes = [1, 96], strides = [1, 1]} : vector<1x128xf32> to vector<1x96xf32>
    %65 = arith.negf %64 : vector<1x96xf32>
    %66 = math.exp %65 : vector<1x96xf32>
    %cst_18 = arith.constant 1.000000e+00 : f32
    %67 = vector.broadcast %cst_18 : f32 to vector<1x96xf32>
    %68 = arith.addf %67, %66 : vector<1x96xf32>
    %69 = arith.divf %67, %68 : vector<1x96xf32>
    %70 = vector.extract_strided_slice %63 {offsets = [0, 96], sizes = [1, 32], strides = [1, 1]} : vector<1x128xf32> to vector<1x32xf32>
    %71 = math.tanh %70 : vector<1x32xf32>
    %72 = vector.extract_strided_slice %69 {offsets = [0, 32], sizes = [1, 32], strides = [1, 1]} : vector<1x96xf32> to vector<1x32xf32>
    %73 = arith.mulf %72, %54 : vector<1x32xf32>
    %74 = vector.extract_strided_slice %69 {offsets = [0, 0], sizes = [1, 32], strides = [1, 1]} : vector<1x96xf32> to vector<1x32xf32>
    %75 = arith.mulf %74, %71 : vector<1x32xf32>
    %76 = arith.addf %73, %75 : vector<1x32xf32>
    %77 = vector.extract_strided_slice %69 {offsets = [0, 64], sizes = [1, 32], strides = [1, 1]} : vector<1x96xf32> to vector<1x32xf32>
    %78 = math.tanh %76 : vector<1x32xf32>
    %79 = arith.mulf %77, %78 : vector<1x32xf32>
    %80 = vector.shape_cast %79 : vector<1x32xf32> to vector<1x1x32xf32>
    %c0_19 = arith.constant 0 : index
    %c2_20 = arith.constant 2 : index
    %c0_21 = arith.constant 0 : index
    %81 = vector.load %arg4[%c0_19, %c2_20, %c0_21] : memref<1x8x32xf32, #tpu.memory_space<vmem>>, vector<1x1x32xf32>
    tpu.vector_store %arg4[%c0_19, %c2_20, %c0_21], %80 {strides = array<i32>} : memref<1x8x32xf32, #tpu.memory_space<vmem>>, vector<1x1x32xf32>,
    %82 = vector.extract_strided_slice %20 {offsets = [0, 3, 0], sizes = [1, 1, 128], strides = [1, 1, 1]} : vector<1x8x128xf32> to vector<1x1x128xf32>
    %83 = vector.shape_cast %82 : vector<1x1x128xf32> to vector<1x128xf32>
    %cst_22 = arith.constant dense<0.000000e+00> : vector<1x128xf32>
    %84 = tpu.matmul %79, %6, %cst_22 {dimension_numbers = #tpu.dot_dimension_numbers<[1], [0], [0], [1], [0, 0, 1, 1], [], []>} : vector<1x32xf32>, vector<32x128xf32>, vector<1x128xf32> -> vector<1x128xf32>
    %85 = arith.addf %83, %84 : vector<1x128xf32>
    %86 = vector.extract_strided_slice %85 {offsets = [0, 0], sizes = [1, 96], strides = [1, 1]} : vector<1x128xf32> to vector<1x96xf32>
    %87 = arith.negf %86 : vector<1x96xf32>
    %88 = math.exp %87 : vector<1x96xf32>
    %cst_23 = arith.constant 1.000000e+00 : f32
    %89 = vector.broadcast %cst_23 : f32 to vector<1x96xf32>
    %90 = arith.addf %89, %88 : vector<1x96xf32>
    %91 = arith.divf %89, %90 : vector<1x96xf32>
    %92 = vector.extract_strided_slice %85 {offsets = [0, 96], sizes = [1, 32], strides = [1, 1]} : vector<1x128xf32> to vector<1x32xf32>
    %93 = math.tanh %92 : vector<1x32xf32>
    %94 = vector.extract_strided_slice %91 {offsets = [0, 32], sizes = [1, 32], strides = [1, 1]} : vector<1x96xf32> to vector<1x32xf32>
    %95 = arith.mulf %94, %76 : vector<1x32xf32>
    %96 = vector.extract_strided_slice %91 {offsets = [0, 0], sizes = [1, 32], strides = [1, 1]} : vector<1x96xf32> to vector<1x32xf32>
    %97 = arith.mulf %96, %93 : vector<1x32xf32>
    %98 = arith.addf %95, %97 : vector<1x32xf32>
    %99 = vector.extract_strided_slice %91 {offsets = [0, 64], sizes = [1, 32], strides = [1, 1]} : vector<1x96xf32> to vector<1x32xf32>
    %100 = math.tanh %98 : vector<1x32xf32>
    %101 = arith.mulf %99, %100 : vector<1x32xf32>
    %102 = vector.shape_cast %101 : vector<1x32xf32> to vector<1x1x32xf32>
    %c0_24 = arith.constant 0 : index
    %c3_25 = arith.constant 3 : index
    %c0_26 = arith.constant 0 : index
    %103 = vector.load %arg4[%c0_24, %c3_25, %c0_26] : memref<1x8x32xf32, #tpu.memory_space<vmem>>, vector<1x1x32xf32>
    tpu.vector_store %arg4[%c0_24, %c3_25, %c0_26], %102 {strides = array<i32>} : memref<1x8x32xf32, #tpu.memory_space<vmem>>, vector<1x1x32xf32>,
    %104 = vector.extract_strided_slice %20 {offsets = [0, 4, 0], sizes = [1, 1, 128], strides = [1, 1, 1]} : vector<1x8x128xf32> to vector<1x1x128xf32>
    %105 = vector.shape_cast %104 : vector<1x1x128xf32> to vector<1x128xf32>
    %cst_27 = arith.constant dense<0.000000e+00> : vector<1x128xf32>
    %106 = tpu.matmul %101, %6, %cst_27 {dimension_numbers = #tpu.dot_dimension_numbers<[1], [0], [0], [1], [0, 0, 1, 1], [], []>} : vector<1x32xf32>, vector<32x128xf32>, vector<1x128xf32> -> vector<1x128xf32>
    %107 = arith.addf %105, %106 : vector<1x128xf32>
    %108 = vector.extract_strided_slice %107 {offsets = [0, 0], sizes = [1, 96], strides = [1, 1]} : vector<1x128xf32> to vector<1x96xf32>
    %109 = arith.negf %108 : vector<1x96xf32>
    %110 = math.exp %109 : vector<1x96xf32>
    %cst_28 = arith.constant 1.000000e+00 : f32
    %111 = vector.broadcast %cst_28 : f32 to vector<1x96xf32>
    %112 = arith.addf %111, %110 : vector<1x96xf32>
    %113 = arith.divf %111, %112 : vector<1x96xf32>
    %114 = vector.extract_strided_slice %107 {offsets = [0, 96], sizes = [1, 32], strides = [1, 1]} : vector<1x128xf32> to vector<1x32xf32>
    %115 = math.tanh %114 : vector<1x32xf32>
    %116 = vector.extract_strided_slice %113 {offsets = [0, 32], sizes = [1, 32], strides = [1, 1]} : vector<1x96xf32> to vector<1x32xf32>
    %117 = arith.mulf %116, %98 : vector<1x32xf32>
    %118 = vector.extract_strided_slice %113 {offsets = [0, 0], sizes = [1, 32], strides = [1, 1]} : vector<1x96xf32> to vector<1x32xf32>
    %119 = arith.mulf %118, %115 : vector<1x32xf32>
    %120 = arith.addf %117, %119 : vector<1x32xf32>
    %121 = vector.extract_strided_slice %113 {offsets = [0, 64], sizes = [1, 32], strides = [1, 1]} : vector<1x96xf32> to vector<1x32xf32>
    %122 = math.tanh %120 : vector<1x32xf32>
    %123 = arith.mulf %121, %122 : vector<1x32xf32>
    %124 = vector.shape_cast %123 : vector<1x32xf32> to vector<1x1x32xf32>
    %c0_29 = arith.constant 0 : index
    %c4 = arith.constant 4 : index
    %c0_30 = arith.constant 0 : index
    %125 = vector.load %arg4[%c0_29, %c4, %c0_30] : memref<1x8x32xf32, #tpu.memory_space<vmem>>, vector<1x1x32xf32>
    tpu.vector_store %arg4[%c0_29, %c4, %c0_30], %124 {strides = array<i32>} : memref<1x8x32xf32, #tpu.memory_space<vmem>>, vector<1x1x32xf32>,
    %126 = vector.extract_strided_slice %20 {offsets = [0, 5, 0], sizes = [1, 1, 128], strides = [1, 1, 1]} : vector<1x8x128xf32> to vector<1x1x128xf32>
    %127 = vector.shape_cast %126 : vector<1x1x128xf32> to vector<1x128xf32>
    %cst_31 = arith.constant dense<0.000000e+00> : vector<1x128xf32>
    %128 = tpu.matmul %123, %6, %cst_31 {dimension_numbers = #tpu.dot_dimension_numbers<[1], [0], [0], [1], [0, 0, 1, 1], [], []>} : vector<1x32xf32>, vector<32x128xf32>, vector<1x128xf32> -> vector<1x128xf32>
    %129 = arith.addf %127, %128 : vector<1x128xf32>
    %130 = vector.extract_strided_slice %129 {offsets = [0, 0], sizes = [1, 96], strides = [1, 1]} : vector<1x128xf32> to vector<1x96xf32>
    %131 = arith.negf %130 : vector<1x96xf32>
    %132 = math.exp %131 : vector<1x96xf32>
    %cst_32 = arith.constant 1.000000e+00 : f32
    %133 = vector.broadcast %cst_32 : f32 to vector<1x96xf32>
    %134 = arith.addf %133, %132 : vector<1x96xf32>
    %135 = arith.divf %133, %134 : vector<1x96xf32>
    %136 = vector.extract_strided_slice %129 {offsets = [0, 96], sizes = [1, 32], strides = [1, 1]} : vector<1x128xf32> to vector<1x32xf32>
    %137 = math.tanh %136 : vector<1x32xf32>
    %138 = vector.extract_strided_slice %135 {offsets = [0, 32], sizes = [1, 32], strides = [1, 1]} : vector<1x96xf32> to vector<1x32xf32>
    %139 = arith.mulf %138, %120 : vector<1x32xf32>
    %140 = vector.extract_strided_slice %135 {offsets = [0, 0], sizes = [1, 32], strides = [1, 1]} : vector<1x96xf32> to vector<1x32xf32>
    %141 = arith.mulf %140, %137 : vector<1x32xf32>
    %142 = arith.addf %139, %141 : vector<1x32xf32>
    %143 = vector.extract_strided_slice %135 {offsets = [0, 64], sizes = [1, 32], strides = [1, 1]} : vector<1x96xf32> to vector<1x32xf32>
    %144 = math.tanh %142 : vector<1x32xf32>
    %145 = arith.mulf %143, %144 : vector<1x32xf32>
    %146 = vector.shape_cast %145 : vector<1x32xf32> to vector<1x1x32xf32>
    %c0_33 = arith.constant 0 : index
    %c5 = arith.constant 5 : index
    %c0_34 = arith.constant 0 : index
    %147 = vector.load %arg4[%c0_33, %c5, %c0_34] : memref<1x8x32xf32, #tpu.memory_space<vmem>>, vector<1x1x32xf32>
    tpu.vector_store %arg4[%c0_33, %c5, %c0_34], %146 {strides = array<i32>} : memref<1x8x32xf32, #tpu.memory_space<vmem>>, vector<1x1x32xf32>,
    %148 = vector.extract_strided_slice %20 {offsets = [0, 6, 0], sizes = [1, 1, 128], strides = [1, 1, 1]} : vector<1x8x128xf32> to vector<1x1x128xf32>
    %149 = vector.shape_cast %148 : vector<1x1x128xf32> to vector<1x128xf32>
    %cst_35 = arith.constant dense<0.000000e+00> : vector<1x128xf32>
    %150 = tpu.matmul %145, %6, %cst_35 {dimension_numbers = #tpu.dot_dimension_numbers<[1], [0], [0], [1], [0, 0, 1, 1], [], []>} : vector<1x32xf32>, vector<32x128xf32>, vector<1x128xf32> -> vector<1x128xf32>
    %151 = arith.addf %149, %150 : vector<1x128xf32>
    %152 = vector.extract_strided_slice %151 {offsets = [0, 0], sizes = [1, 96], strides = [1, 1]} : vector<1x128xf32> to vector<1x96xf32>
    %153 = arith.negf %152 : vector<1x96xf32>
    %154 = math.exp %153 : vector<1x96xf32>
    %cst_36 = arith.constant 1.000000e+00 : f32
    %155 = vector.broadcast %cst_36 : f32 to vector<1x96xf32>
    %156 = arith.addf %155, %154 : vector<1x96xf32>
    %157 = arith.divf %155, %156 : vector<1x96xf32>
    %158 = vector.extract_strided_slice %151 {offsets = [0, 96], sizes = [1, 32], strides = [1, 1]} : vector<1x128xf32> to vector<1x32xf32>
    %159 = math.tanh %158 : vector<1x32xf32>
    %160 = vector.extract_strided_slice %157 {offsets = [0, 32], sizes = [1, 32], strides = [1, 1]} : vector<1x96xf32> to vector<1x32xf32>
    %161 = arith.mulf %160, %142 : vector<1x32xf32>
    %162 = vector.extract_strided_slice %157 {offsets = [0, 0], sizes = [1, 32], strides = [1, 1]} : vector<1x96xf32> to vector<1x32xf32>
    %163 = arith.mulf %162, %159 : vector<1x32xf32>
    %164 = arith.addf %161, %163 : vector<1x32xf32>
    %165 = vector.extract_strided_slice %157 {offsets = [0, 64], sizes = [1, 32], strides = [1, 1]} : vector<1x96xf32> to vector<1x32xf32>
    %166 = math.tanh %164 : vector<1x32xf32>
    %167 = arith.mulf %165, %166 : vector<1x32xf32>
    %168 = vector.shape_cast %167 : vector<1x32xf32> to vector<1x1x32xf32>
    %c0_37 = arith.constant 0 : index
    %c6 = arith.constant 6 : index
    %c0_38 = arith.constant 0 : index
    %169 = vector.load %arg4[%c0_37, %c6, %c0_38] : memref<1x8x32xf32, #tpu.memory_space<vmem>>, vector<1x1x32xf32>
    tpu.vector_store %arg4[%c0_37, %c6, %c0_38], %168 {strides = array<i32>} : memref<1x8x32xf32, #tpu.memory_space<vmem>>, vector<1x1x32xf32>,
    %170 = vector.extract_strided_slice %20 {offsets = [0, 7, 0], sizes = [1, 1, 128], strides = [1, 1, 1]} : vector<1x8x128xf32> to vector<1x1x128xf32>
    %171 = vector.shape_cast %170 : vector<1x1x128xf32> to vector<1x128xf32>
    %cst_39 = arith.constant dense<0.000000e+00> : vector<1x128xf32>
    %172 = tpu.matmul %167, %6, %cst_39 {dimension_numbers = #tpu.dot_dimension_numbers<[1], [0], [0], [1], [0, 0, 1, 1], [], []>} : vector<1x32xf32>, vector<32x128xf32>, vector<1x128xf32> -> vector<1x128xf32>
    %173 = arith.addf %171, %172 : vector<1x128xf32>
    %174 = vector.extract_strided_slice %173 {offsets = [0, 0], sizes = [1, 96], strides = [1, 1]} : vector<1x128xf32> to vector<1x96xf32>
    %175 = arith.negf %174 : vector<1x96xf32>
    %176 = math.exp %175 : vector<1x96xf32>
    %cst_40 = arith.constant 1.000000e+00 : f32
    %177 = vector.broadcast %cst_40 : f32 to vector<1x96xf32>
    %178 = arith.addf %177, %176 : vector<1x96xf32>
    %179 = arith.divf %177, %178 : vector<1x96xf32>
    %180 = vector.extract_strided_slice %173 {offsets = [0, 96], sizes = [1, 32], strides = [1, 1]} : vector<1x128xf32> to vector<1x32xf32>
    %181 = math.tanh %180 : vector<1x32xf32>
    %182 = vector.extract_strided_slice %179 {offsets = [0, 32], sizes = [1, 32], strides = [1, 1]} : vector<1x96xf32> to vector<1x32xf32>
    %183 = arith.mulf %182, %164 : vector<1x32xf32>
    %184 = vector.extract_strided_slice %179 {offsets = [0, 0], sizes = [1, 32], strides = [1, 1]} : vector<1x96xf32> to vector<1x32xf32>
    %185 = arith.mulf %184, %181 : vector<1x32xf32>
    %186 = arith.addf %183, %185 : vector<1x32xf32>
    %187 = vector.extract_strided_slice %179 {offsets = [0, 64], sizes = [1, 32], strides = [1, 1]} : vector<1x96xf32> to vector<1x32xf32>
    %188 = math.tanh %186 : vector<1x32xf32>
    %189 = arith.mulf %187, %188 : vector<1x32xf32>
    %190 = vector.shape_cast %189 : vector<1x32xf32> to vector<1x1x32xf32>
    %c0_41 = arith.constant 0 : index
    %c7 = arith.constant 7 : index
    %c0_42 = arith.constant 0 : index
    %191 = vector.load %arg4[%c0_41, %c7, %c0_42] : memref<1x8x32xf32, #tpu.memory_space<vmem>>, vector<1x1x32xf32>
    tpu.vector_store %arg4[%c0_41, %c7, %c0_42], %190 {strides = array<i32>} : memref<1x8x32xf32, #tpu.memory_space<vmem>>, vector<1x1x32xf32>,
    %c0_43 = arith.constant 0 : index
    %c0_44 = arith.constant 0 : index
    %c0_45 = arith.constant 0 : index
    %192 = vector.load %arg4[%c0_43, %c0_44, %c0_45] : memref<1x8x32xf32, #tpu.memory_space<vmem>>, vector<1x8x32xf32>
    %193 = vector.shape_cast %192 : vector<1x8x32xf32> to vector<8x32xf32>
    %cst_46 = arith.constant dense<0.000000e+00> : vector<8x128xf32>
    %194 = tpu.matmul %193, %7, %cst_46 {dimension_numbers = #tpu.dot_dimension_numbers<[1], [0], [0], [1], [0, 0, 1, 1], [], []>} : vector<8x32xf32>, vector<32x128xf32>, vector<8x128xf32> -> vector<8x128xf32>
    %195 = vector.broadcast %8 : vector<1x128xf32> to vector<8x128xf32>
    %196 = arith.addf %194, %195 : vector<8x128xf32>
    %197 = vector.shape_cast %196 : vector<8x128xf32> to vector<1x8x128xf32>
    %c0_47 = arith.constant 0 : index
    %c0_48 = arith.constant 0 : index
    %c0_49 = arith.constant 0 : index
    %198 = vector.load %arg3[%c0_47, %c0_48, %c0_49] : memref<1x8x128xf32, #tpu.memory_space<vmem>>, vector<1x8x128xf32>
    tpu.vector_store %arg3[%c0_47, %c0_48, %c0_49], %197 {strides = array<i32>} : memref<1x8x128xf32, #tpu.memory_space<vmem>>, vector<1x8x128xf32>,
    return
  }
  func.func @transform_0(%arg0: i32) -> (i32, i32, i32) {
    %c0_i32 = arith.constant 0 : i32
    %c0_i32_0 = arith.constant 0 : i32
    %c0_i32_1 = arith.constant 0 : i32
    return %arg0, %c0_i32, %c0_i32_0 : i32, i32, i32
  }
  func.func @transform_1(%arg0: i32) -> (i32, i32) {
    %c0_i32 = arith.constant 0 : i32
    %c0_i32_0 = arith.constant 0 : i32
    %c0_i32_1 = arith.constant 0 : i32
    return %c0_i32, %c0_i32_0 : i32, i32
  }
  func.func @transform_2(%arg0: i32) -> (i32, i32, i32) {
    %c0_i32 = arith.constant 0 : i32
    %c0_i32_0 = arith.constant 0 : i32
    %c0_i32_1 = arith.constant 0 : i32
    return %arg0, %c0_i32, %c0_i32_0 : i32, i32, i32
  }
}

</mosaic_0001>

<llo_original>
// kernel: lstm_predictor_forward.1
$region0: #{lstm_predictor_forward.1}
  #allocation0 [shape = 'u32[]', space=smem, size = 0x4, offset = 0x4, fixed_abs, tag = 'smem constant byte address 0x4 - core index']
  #allocation1 [shape = 'u32[144,128]{1,0:T(1,128)}', space=vmem, size = 0x12000, scoped, tag = 'internal scratch']
  #allocation2 [shape = 'f32[1,8,32]{2,1,0:T(8,128)}', space=vmem, size = 0x1000, scoped, tag = 'scratch operand']
  %s0 = inlined_call_operand.vmem [shape: f32[1,8,2], index: 0, kind: input, shape index: {}]
  %s1 = inlined_call_operand.hbm [shape: f32[68,128], index: 1, kind: input, shape index: {}]
  %s2 = inlined_call_operand.vmem [shape: f32[1,8,128], index: 2, kind: output, shape index: {}]
  %s3 = sld [smem:[#allocation0]]
  $region22: #{lstm_predictor_forward.1} parent=0
    _
  %s5 = ssub.s32 1, %s3
  %s6 = scalar_select 0, %s5, %s3
  $region1: #{lstm_predictor_forward.1} parent=0
    #allocation3 [shape = 'u8[36864]{0}', space=vmem, size = 0x9000, scoped, tag = 'input window, operand 1, single buffered']
    #allocation4 [shape = 's32[1]{0}', space=sflag, size = 0x4, scoped, tag = 'scoped memory for lstm_predictor_forward.1']
    %7 = vsyncpa [#allocation4], 0
    // Predicated region
    $region2: #{lstm_predictor_forward.1} parent=1 // pred_check
      _
    $region3: #{lstm_predictor_forward.1} parent=1 // pred_check_branch
      %9 = sbr.rel (0) target = $region5
    $region4: #{lstm_predictor_forward.1} parent=1 // pred_region
      _
    $region5: #{lstm_predictor_forward.1} parent=1 // pred_fallthru
      _
    // Predicated region
    $region6: #{lstm_predictor_forward.1} parent=1 // pred_check
      _
    $region7: #{lstm_predictor_forward.1} parent=1 // pred_check_branch
      %11 = sbr.rel (0) target = $region9
    $region8: #{lstm_predictor_forward.1} parent=1 // pred_region
      %s13 = ssub.s32 1152, 1152
      %14 = vsyncadd [#allocation4], %s13
      %s15 = sshll.u32 [#allocation3], 4
      %s16 = int_to_ptr.vmem [resolvable:$true] %s15
      %21 = dma.hbm_to_vmem [thread:$0]  %s1, 1152, %s16, [#allocation4], 128, 128, 8
    $region9: #{lstm_predictor_forward.1} parent=1 // pred_fallthru
      _
    // Predicated region
    $region10: #{lstm_predictor_forward.1} parent=1 // pred_check
      _
    $region11: #{lstm_predictor_forward.1} parent=1 // pred_check_branch
      %23 = sbr.rel (0) target = $region13
    $region12: #{lstm_predictor_forward.1} parent=1 // pred_region
      %24 = dma.done [#allocation4], 1152
    $region13: #{lstm_predictor_forward.1} parent=1 // pred_fallthru
      _
    %v25 = vld [vmem:[#allocation3] sm:$0x1]
    %v26 = vld [vmem:[#allocation3 + $0x1] sm:$0x1]
    %v27 = vld [vmem:[#allocation3 + $0x2] sm:$0x1]
    %v28 = vld [vmem:[#allocation3 + $0x3] sm:$0xff]
    %v29 = vld [vmem:[#allocation3 + $0xb] sm:$0xff]
    %v30 = vld [vmem:[#allocation3 + $0x13] sm:$0xff]
    %v31 = vld [vmem:[#allocation3 + $0x1b] sm:$0xff]
    %v32 = vld [vmem:[#allocation3 + $0x23] sm:$0xff]
    %v33 = vld [vmem:[#allocation3 + $0x2b] sm:$0xff]
    %v34 = vld [vmem:[#allocation3 + $0x33] sm:$0xff]
    %v35 = vld [vmem:[#allocation3 + $0x3b] sm:$0xff]
    %v36 = vld [vmem:[#allocation3 + $0x43] sm:$0x1]
    %v37 = vld [vmem:[%s0] sm:$0xff]
    %39 = vset.pattern.permute.xlu0 0
    %40 = vperm.xlu0 %39, %v37
    %v41 = vpop.permute.xlu0 %40
    %v43 = vlaneseq
    %v44 = vshrl.u32 %v43, 7
    %v45 = vsub.s32 0, %v44
    %v46 = vrot.slane %v25, %v45
    %v47 = vmul.f32 %v41, %v46
    %48 = vset.pattern.permute.xlu0 1
    %49 = vperm.xlu0 %48, %v37
    %v50 = vpop.permute.xlu0 %49
    %v52 = vlaneseq
    %v53 = vshrl.u32 %v52, 7
    %v54 = vsub.s32 0, %v53
    %v55 = vrot.slane %v26, %v54
    %v56 = vmul.f32 %v50, %v55
    %v57 = vadd.f32 %v47, %v56
    %v58 = vlaneseq
    %v59 = vshrl.u32 %v58, 7
    %v60 = vsub.s32 0, %v59
    %v61 = vrot.slane %v27, %v60
    %v62 = vadd.f32 %v57, %v61
    %v63 = vxor.u32 %v62, 2147483648
    %v64 = vmul.f32 %v63, 1.442695
    %v65 = vpow.pop %v64
    %v66 = vadd.f32 %v65, 1.0
    %v67 = vrcp.pop %v66
    %v68 = vmul.f32 1.0, %v67
    %v69 = vtanh.pop %v62
    %71 = vrot.lane.b32.xlu0 %v69, 32
    %v72 = vpop.permute.xlu0 %71
    %v74 = vmul.f32 %v68, %v72
    %v75 = vtanh.pop %v74
    %77 = vrot.lane.b32.xlu0 %v75, 64
    %v78 = vpop.permute.xlu0 %77
    %v80 = vmul.f32 %v68, %v78
    %82 = vrot.lane.b32.xlu0 %v80, 64
    %v83 = vpop.permute.xlu0 %82
    %vm85 = vcmask 253952
    %86 = vst.msk [vmem:[#allocation2] sm:$0x1] %vm85, %v83
    %vm87 = vcmask 261120
    %v88 = vsel %vm87, %v83, 0
    %90 = vmatprep.subr.mxu0 0.0
    %91 = vmatpush1.msra.mxu0 %v28
    %92 = vmatprep.subr.mxu0 0.0
    %93 = vmatpush1.msra.mxu0 %v29
    %94 = vmatprep.subr.mxu0 0.0
    %95 = vmatpush1.msra.mxu0 %v30
    %96 = vmatprep.subr.mxu0 0.0
    %97 = vmatpush1.msra.mxu0 %v31
    %98 = vmatprep.subr.mxu0 0.0
    %99 = vmatpush1.msra.mxu0 0.0
    %100 = vmatprep.subr.mxu0 0.0
    %101 = vmatpush1.msra.mxu0 0.0
    %102 = vmatprep.subr.mxu0 0.0
    %103 = vmatpush1.msra.mxu0 0.0
    %104 = vmatprep.subr.mxu0 0.0
    %105 = vmatpush1.msra.mxu0 0.0
    %106 = vmatprep.subr.mxu0 0.0
    %107 = vmatpush1.msra.mxu0 0.0
    %108 = vmatprep.subr.mxu0 0.0
    %109 = vmatpush1.msra.mxu0 0.0
    %110 = vmatprep.subr.mxu0 0.0
    %111 = vmatpush1.msra.mxu0 0.0
    %112 = vmatprep.subr.mxu0 0.0
    %113 = vmatpush1.msra.mxu0 0.0
    %114 = vmatprep.subr.mxu0 0.0
    %115 = vmatpush1.msra.mxu0 0.0
    %116 = vmatprep.subr.mxu0 0.0
    %117 = vmatpush1.msra.mxu0 0.0
    %118 = vmatprep.subr.mxu0 0.0
    %119 = vmatpush1.msra.mxu0 0.0
    %120 = vmatprep.subr.mxu0 0.0
    %121 = vmatpush1.msra.mxu0 0.0
    %122 = vmatprep.subr.mxu0 0.0
    %123 = vmatpush1.msra.mxu0 0.0
    %124 = vmatprep.subr.mxu0 0.0
    %125 = vmatpush1.msra.mxu0 0.0
    %126 = vmatprep.subr.mxu0 0.0
    %127 = vmatpush1.msra.mxu0 0.0
    %128 = vmatprep.subr.mxu0 0.0
    %129 = vmatpush1.msra.mxu0 0.0
    %130 = vmatprep.subr.mxu0 0.0
    %131 = vmatpush1.msra.mxu0 0.0
    %132 = vmatprep.subr.mxu0 0.0
    %133 = vmatpush1.msra.mxu0 0.0
    %134 = vmatprep.subr.mxu0 0.0
    %135 = vmatpush1.msra.mxu0 0.0
    %136 = vmatprep.subr.mxu0 0.0
    %137 = vmatpush1.msra.mxu0 0.0
    %138 = vmatprep.subr.mxu0 0.0
    %139 = vmatpush1.msra.mxu0 0.0
    %140 = vmatprep.subr.mxu0 0.0
    %141 = vmatpush1.msra.mxu0 0.0
    %142 = vmatprep.subr.mxu0 0.0
    %143 = vmatpush1.msra.mxu0 0.0
    %144 = vmatprep.subr.mxu0 0.0
    %145 = vmatpush1.msra.mxu0 0.0
    %146 = vmatprep.subr.mxu0 0.0
    %147 = vmatpush1.msra.mxu0 0.0
    %148 = vmatprep.subr.mxu0 0.0
    %149 = vmatpush1.msra.mxu0 0.0
    %150 = vmatprep.subr.mxu0 0.0
    %151 = vmatpush1.msra.mxu0 0.0
    %152 = vmatprep.subr.mxu0 0.0
    %153 = vmatpush1.msra.mxu0 0.0
    %154 = vmatprep.mubr.f32.mxu0 0.0
    %155 = vmatmul.mubr.f32.gmra.mrb[0].mxu0 %v88
    %v156 = vpop.f32.mrb[0].mxu0
    %v157 = vadd.f32 0.0, %v156
    %v158 = vpop.f32.mrb[0].mxu0
    %159 = vdwg.mxu0
    %v161 = vrot.slane %v157, 7
    %v163 = vadd.f32 %v62, %v161
    %v164 = vxor.u32 %v163, 2147483648
    %v165 = vmul.f32 %v164, 1.442695
    %v166 = vpow.pop %v165
    %v167 = vadd.f32 %v166, 1.0
    %v168 = vrcp.pop %v167
    %v169 = vmul.f32 1.0, %v168
    %v170 = vtanh.pop %v163
    %v172 = vrot.slane %v74, 7
    %173 = vrot.lane.b32.xlu0 %v172, 32
    %v174 = vpop.permute.xlu0 %173
    %v176 = vmul.f32 %v169, %v174
    %178 = vrot.lane.b32.xlu0 %v170, 32
    %v179 = vpop.permute.xlu0 %178
    %v181 = vmul.f32 %v169, %v179
    %183 = vrot.lane.b32.xlu0 %v181, 32
    %v184 = vpop.permute.xlu0 %183
    %v186 = vadd.f32 %v176, %v184
    %v187 = vtanh.pop %v186
    %189 = vrot.lane.b32.xlu0 %v187, 32
    %v190 = vpop.permute.xlu0 %189
    %v192 = vmul.f32 %v169, %v190
    %194 = vrot.lane.b32.xlu0 %v192, 64
    %v195 = vpop.permute.xlu0 %194
    %vm197 = vcmask 254977
    %198 = vst.msk [vmem:[#allocation2] sm:$0x2] %vm197, %v195
    %v199 = vrot.slane %v192, 1
    %200 = vrot.lane.b32.xlu0 %v199, 64
    %v201 = vpop.permute.xlu0 %200
    %v202 = vsel %vm87, %v201, 0
    %204 = vmatprep.subr.mxu0 0.0
    %205 = vmatpush1.msra.mxu0 %v28
    %206 = vmatprep.subr.mxu0 0.0
    %207 = vmatpush1.msra.mxu0 %v29
    %208 = vmatprep.subr.mxu0 0.0
    %209 = vmatpush1.msra.mxu0 %v30
    %210 = vmatprep.subr.mxu0 0.0
    %211 = vmatpush1.msra.mxu0 %v31
    %212 = vmatprep.subr.mxu0 0.0
    %213 = vmatpush1.msra.mxu0 0.0
    %214 = vmatprep.subr.mxu0 0.0
    %215 = vmatpush1.msra.mxu0 0.0
    %216 = vmatprep.subr.mxu0 0.0
    %217 = vmatpush1.msra.mxu0 0.0
    %218 = vmatprep.subr.mxu0 0.0
    %219 = vmatpush1.msra.mxu0 0.0
    %220 = vmatprep.subr.mxu0 0.0
    %221 = vmatpush1.msra.mxu0 0.0
    %222 = vmatprep.subr.mxu0 0.0
    %223 = vmatpush1.msra.mxu0 0.0
    %224 = vmatprep.subr.mxu0 0.0
    %225 = vmatpush1.msra.mxu0 0.0
    %226 = vmatprep.subr.mxu0 0.0
    %227 = vmatpush1.msra.mxu0 0.0
    %228 = vmatprep.subr.mxu0 0.0
    %229 = vmatpush1.msra.mxu0 0.0
    %230 = vmatprep.subr.mxu0 0.0
    %231 = vmatpush1.msra.mxu0 0.0
    %232 = vmatprep.subr.mxu0 0.0
    %233 = vmatpush1.msra.mxu0 0.0
    %234 = vmatprep.subr.mxu0 0.0
    %235 = vmatpush1.msra.mxu0 0.0
    %236 = vmatprep.subr.mxu0 0.0
    %237 = vmatpush1.msra.mxu0 0.0
    %238 = vmatprep.subr.mxu0 0.0
    %239 = vmatpush1.msra.mxu0 0.0
    %240 = vmatprep.subr.mxu0 0.0
    %241 = vmatpush1.msra.mxu0 0.0
    %242 = vmatprep.subr.mxu0 0.0
    %243 = vmatpush1.msra.mxu0 0.0
    %244 = vmatprep.subr.mxu0 0.0
    %245 = vmatpush1.msra.mxu0 0.0
    %246 = vmatprep.subr.mxu0 0.0
    %247 = vmatpush1.msra.mxu0 0.0
    %248 = vmatprep.subr.mxu0 0.0
    %249 = vmatpush1.msra.mxu0 0.0
    %250 = vmatprep.subr.mxu0 0.0
    %251 = vmatpush1.msra.mxu0 0.0
    %252 = vmatprep.subr.mxu0 0.0
    %253 = vmatpush1.msra.mxu0 0.0
    %254 = vmatprep.subr.mxu0 0.0
    %255 = vmatpush1.msra.mxu0 0.0
    %256 = vmatprep.subr.mxu0 0.0
    %257 = vmatpush1.msra.mxu0 0.0
    %258 = vmatprep.subr.mxu0 0.0
    %259 = vmatpush1.msra.mxu0 0.0
    %260 = vmatprep.subr.mxu0 0.0
    %261 = vmatpush1.msra.mxu0 0.0
    %262 = vmatprep.subr.mxu0 0.0
    %263 = vmatpush1.msra.mxu0 0.0
    %264 = vmatprep.subr.mxu0 0.0
    %265 = vmatpush1.msra.mxu0 0.0
    %266 = vmatprep.subr.mxu0 0.0
    %267 = vmatpush1.msra.mxu0 0.0
    %268 = vmatprep.mubr.f32.mxu0 0.0
    %269 = vmatmul.mubr.f32.gmra.mrb[0].mxu0 %v202
    %v270 = vpop.f32.mrb[0].mxu0
    %v271 = vadd.f32 0.0, %v270
    %v272 = vpop.f32.mrb[0].mxu0
    %273 = vdwg.mxu0
    %v275 = vrot.slane %v271, 6
    %v277 = vadd.f32 %v62, %v275
    %v278 = vxor.u32 %v277, 2147483648
    %v279 = vmul.f32 %v278, 1.442695
    %v280 = vpow.pop %v279
    %v281 = vadd.f32 %v280, 1.0
    %v282 = vrcp.pop %v281
    %v283 = vmul.f32 1.0, %v282
    %v284 = vtanh.pop %v277
    %v286 = vrot.slane %v186, 7
    %v288 = vmul.f32 %v283, %v286
    %290 = vrot.lane.b32.xlu0 %v284, 32
    %v291 = vpop.permute.xlu0 %290
    %v293 = vmul.f32 %v283, %v291
    %295 = vrot.lane.b32.xlu0 %v293, 32
    %v296 = vpop.permute.xlu0 %295
    %v298 = vadd.f32 %v288, %v296
    %v299 = vtanh.pop %v298
    %301 = vrot.lane.b32.xlu0 %v299, 32
    %v302 = vpop.permute.xlu0 %301
    %v304 = vmul.f32 %v283, %v302
    %306 = vrot.lane.b32.xlu0 %v304, 64
    %v307 = vpop.permute.xlu0 %306
    %vm309 = vcmask 256002
    %310 = vst.msk [vmem:[#allocation2] sm:$0x4] %vm309, %v307
    %v311 = vrot.slane %v304, 2
    %312 = vrot.lane.b32.xlu0 %v311, 64
    %v313 = vpop.permute.xlu0 %312
    %v314 = vsel %vm87, %v313, 0
    %316 = vmatprep.subr.mxu0 0.0
    %317 = vmatpush1.msra.mxu0 %v28
    %318 = vmatprep.subr.mxu0 0.0
    %319 = vmatpush1.msra.mxu0 %v29
    %320 = vmatprep.subr.mxu0 0.0
    %321 = vmatpush1.msra.mxu0 %v30
    %322 = vmatprep.subr.mxu0 0.0
    %323 = vmatpush1.msra.mxu0 %v31
    %324 = vmatprep.subr.mxu0 0.0
    %325 = vmatpush1.msra.mxu0 0.0
    %326 = vmatprep.subr.mxu0 0.0
    %327 = vmatpush1.msra.mxu0 0.0
    %328 = vmatprep.subr.mxu0 0.0
    %329 = vmatpush1.msra.mxu0 0.0
    %330 = vmatprep.subr.mxu0 0.0
    %331 = vmatpush1.msra.mxu0 0.0
    %332 = vmatprep.subr.mxu0 0.0
    %333 = vmatpush1.msra.mxu0 0.0
    %334 = vmatprep.subr.mxu0 0.0
    %335 = vmatpush1.msra.mxu0 0.0
    %336 = vmatprep.subr.mxu0 0.0
    %337 = vmatpush1.msra.mxu0 0.0
    %338 = vmatprep.subr.mxu0 0.0
    %339 = vmatpush1.msra.mxu0 0.0
    %340 = vmatprep.subr.mxu0 0.0
    %341 = vmatpush1.msra.mxu0 0.0
    %342 = vmatprep.subr.mxu0 0.0
    %343 = vmatpush1.msra.mxu0 0.0
    %344 = vmatprep.subr.mxu0 0.0
    %345 = vmatpush1.msra.mxu0 0.0
    %346 = vmatprep.subr.mxu0 0.0
    %347 = vmatpush1.msra.mxu0 0.0
    %348 = vmatprep.subr.mxu0 0.0
    %349 = vmatpush1.msra.mxu0 0.0
    %350 = vmatprep.subr.mxu0 0.0
    %351 = vmatpush1.msra.mxu0 0.0
    %352 = vmatprep.subr.mxu0 0.0
    %353 = vmatpush1.msra.mxu0 0.0
    %354 = vmatprep.subr.mxu0 0.0
    %355 = vmatpush1.msra.mxu0 0.0
    %356 = vmatprep.subr.mxu0 0.0
    %357 = vmatpush1.msra.mxu0 0.0
    %358 = vmatprep.subr.mxu0 0.0
    %359 = vmatpush1.msra.mxu0 0.0
    %360 = vmatprep.subr.mxu0 0.0
    %361 = vmatpush1.msra.mxu0 0.0
    %362 = vmatprep.subr.mxu0 0.0
    %363 = vmatpush1.msra.mxu0 0.0
    %364 = vmatprep.subr.mxu0 0.0
    %365 = vmatpush1.msra.mxu0 0.0
    %366 = vmatprep.subr.mxu0 0.0
    %367 = vmatpush1.msra.mxu0 0.0
    %368 = vmatprep.subr.mxu0 0.0
    %369 = vmatpush1.msra.mxu0 0.0
    %370 = vmatprep.subr.mxu0 0.0
    %371 = vmatpush1.msra.mxu0 0.0
    %372 = vmatprep.subr.mxu0 0.0
    %373 = vmatpush1.msra.mxu0 0.0
    %374 = vmatprep.subr.mxu0 0.0
    %375 = vmatpush1.msra.mxu0 0.0
    %376 = vmatprep.subr.mxu0 0.0
    %377 = vmatpush1.msra.mxu0 0.0
    %378 = vmatprep.subr.mxu0 0.0
    %379 = vmatpush1.msra.mxu0 0.0
    %380 = vmatprep.mubr.f32.mxu0 0.0
    %381 = vmatmul.mubr.f32.gmra.mrb[0].mxu0 %v314
    %v382 = vpop.f32.mrb[0].mxu0
    %v383 = vadd.f32 0.0, %v382
    %v384 = vpop.f32.mrb[0].mxu0
    %385 = vdwg.mxu0
    %v387 = vrot.slane %v383, 5
    %v389 = vadd.f32 %v62, %v387
    %v390 = vxor.u32 %v389, 2147483648
    %v391 = vmul.f32 %v390, 1.442695
    %v392 = vpow.pop %v391
    %v393 = vadd.f32 %v392, 1.0
    %v394 = vrcp.pop %v393
    %v395 = vmul.f32 1.0, %v394
    %v396 = vtanh.pop %v389
    %v398 = vrot.slane %v298, 7
    %v400 = vmul.f32 %v395, %v398
    %402 = vrot.lane.b32.xlu0 %v396, 32
    %v403 = vpop.permute.xlu0 %402
    %v405 = vmul.f32 %v395, %v403
    %407 = vrot.lane.b32.xlu0 %v405, 32
    %v408 = vpop.permute.xlu0 %407
    %v410 = vadd.f32 %v400, %v408
    %v411 = vtanh.pop %v410
    %413 = vrot.lane.b32.xlu0 %v411, 32
    %v414 = vpop.permute.xlu0 %413
    %v416 = vmul.f32 %v395, %v414
    %418 = vrot.lane.b32.xlu0 %v416, 64
    %v419 = vpop.permute.xlu0 %418
    %vm421 = vcmask 257027
    %422 = vst.msk [vmem:[#allocation2] sm:$0x8] %vm421, %v419
    %v423 = vrot.slane %v416, 3
    %424 = vrot.lane.b32.xlu0 %v423, 64
    %v425 = vpop.permute.xlu0 %424
    %v426 = vsel %vm87, %v425, 0
    %428 = vmatprep.subr.mxu0 0.0
    %429 = vmatpush1.msra.mxu0 %v28
    %430 = vmatprep.subr.mxu0 0.0
    %431 = vmatpush1.msra.mxu0 %v29
    %432 = vmatprep.subr.mxu0 0.0
    %433 = vmatpush1.msra.mxu0 %v30
    %434 = vmatprep.subr.mxu0 0.0
    %435 = vmatpush1.msra.mxu0 %v31
    %436 = vmatprep.subr.mxu0 0.0
    %437 = vmatpush1.msra.mxu0 0.0
    %438 = vmatprep.subr.mxu0 0.0
    %439 = vmatpush1.msra.mxu0 0.0
    %440 = vmatprep.subr.mxu0 0.0
    %441 = vmatpush1.msra.mxu0 0.0
    %442 = vmatprep.subr.mxu0 0.0
    %443 = vmatpush1.msra.mxu0 0.0
    %444 = vmatprep.subr.mxu0 0.0
    %445 = vmatpush1.msra.mxu0 0.0
    %446 = vmatprep.subr.mxu0 0.0
    %447 = vmatpush1.msra.mxu0 0.0
    %448 = vmatprep.subr.mxu0 0.0
    %449 = vmatpush1.msra.mxu0 0.0
    %450 = vmatprep.subr.mxu0 0.0
    %451 = vmatpush1.msra.mxu0 0.0
    %452 = vmatprep.subr.mxu0 0.0
    %453 = vmatpush1.msra.mxu0 0.0
    %454 = vmatprep.subr.mxu0 0.0
    %455 = vmatpush1.msra.mxu0 0.0
    %456 = vmatprep.subr.mxu0 0.0
    %457 = vmatpush1.msra.mxu0 0.0
    %458 = vmatprep.subr.mxu0 0.0
    %459 = vmatpush1.msra.mxu0 0.0
    %460 = vmatprep.subr.mxu0 0.0
    %461 = vmatpush1.msra.mxu0 0.0
    %462 = vmatprep.subr.mxu0 0.0
    %463 = vmatpush1.msra.mxu0 0.0
    %464 = vmatprep.subr.mxu0 0.0
    %465 = vmatpush1.msra.mxu0 0.0
    %466 = vmatprep.subr.mxu0 0.0
    %467 = vmatpush1.msra.mxu0 0.0
    %468 = vmatprep.subr.mxu0 0.0
    %469 = vmatpush1.msra.mxu0 0.0
    %470 = vmatprep.subr.mxu0 0.0
    %471 = vmatpush1.msra.mxu0 0.0
    %472 = vmatprep.subr.mxu0 0.0
    %473 = vmatpush1.msra.mxu0 0.0
    %474 = vmatprep.subr.mxu0 0.0
    %475 = vmatpush1.msra.mxu0 0.0
    %476 = vmatprep.subr.mxu0 0.0
    %477 = vmatpush1.msra.mxu0 0.0
    %478 = vmatprep.subr.mxu0 0.0
    %479 = vmatpush1.msra.mxu0 0.0
    %480 = vmatprep.subr.mxu0 0.0
    %481 = vmatpush1.msra.mxu0 0.0
    %482 = vmatprep.subr.mxu0 0.0
    %483 = vmatpush1.msra.mxu0 0.0
    %484 = vmatprep.subr.mxu0 0.0
    %485 = vmatpush1.msra.mxu0 0.0
    %486 = vmatprep.subr.mxu0 0.0
    %487 = vmatpush1.msra.mxu0 0.0
    %488 = vmatprep.subr.mxu0 0.0
    %489 = vmatpush1.msra.mxu0 0.0
    %490 = vmatprep.subr.mxu0 0.0
    %491 = vmatpush1.msra.mxu0 0.0
    %492 = vmatprep.mubr.f32.mxu0 0.0
    %493 = vmatmul.mubr.f32.gmra.mrb[0].mxu0 %v426
    %v494 = vpop.f32.mrb[0].mxu0
    %v495 = vadd.f32 0.0, %v494
    %v496 = vpop.f32.mrb[0].mxu0
    %497 = vdwg.mxu0
    %v499 = vrot.slane %v495, 4
    %v501 = vadd.f32 %v62, %v499
    %v502 = vxor.u32 %v501, 2147483648
    %v503 = vmul.f32 %v502, 1.442695
    %v504 = vpow.pop %v503
    %v505 = vadd.f32 %v504, 1.0
    %v506 = vrcp.pop %v505
    %v507 = vmul.f32 1.0, %v506
    %v508 = vtanh.pop %v501
    %v510 = vrot.slane %v410, 7
    %v512 = vmul.f32 %v507, %v510
    %514 = vrot.lane.b32.xlu0 %v508, 32
    %v515 = vpop.permute.xlu0 %514
    %v517 = vmul.f32 %v507, %v515
    %519 = vrot.lane.b32.xlu0 %v517, 32
    %v520 = vpop.permute.xlu0 %519
    %v522 = vadd.f32 %v512, %v520
    %v523 = vtanh.pop %v522
    %525 = vrot.lane.b32.xlu0 %v523, 32
    %v526 = vpop.permute.xlu0 %525
    %v528 = vmul.f32 %v507, %v526
    %530 = vrot.lane.b32.xlu0 %v528, 64
    %v531 = vpop.permute.xlu0 %530
    %vm533 = vcmask 258052
    %534 = vst.msk [vmem:[#allocation2] sm:$0x10] %vm533, %v531
    %v535 = vrot.slane %v528, 4
    %536 = vrot.lane.b32.xlu0 %v535, 64
    %v537 = vpop.permute.xlu0 %536
    %v538 = vsel %vm87, %v537, 0
    %540 = vmatprep.subr.mxu0 0.0
    %541 = vmatpush1.msra.mxu0 %v28
    %542 = vmatprep.subr.mxu0 0.0
    %543 = vmatpush1.msra.mxu0 %v29
    %544 = vmatprep.subr.mxu0 0.0
    %545 = vmatpush1.msra.mxu0 %v30
    %546 = vmatprep.subr.mxu0 0.0
    %547 = vmatpush1.msra.mxu0 %v31
    %548 = vmatprep.subr.mxu0 0.0
    %549 = vmatpush1.msra.mxu0 0.0
    %550 = vmatprep.subr.mxu0 0.0
    %551 = vmatpush1.msra.mxu0 0.0
    %552 = vmatprep.subr.mxu0 0.0
    %553 = vmatpush1.msra.mxu0 0.0
    %554 = vmatprep.subr.mxu0 0.0
    %555 = vmatpush1.msra.mxu0 0.0
    %556 = vmatprep.subr.mxu0 0.0
    %557 = vmatpush1.msra.mxu0 0.0
    %558 = vmatprep.subr.mxu0 0.0
    %559 = vmatpush1.msra.mxu0 0.0
    %560 = vmatprep.subr.mxu0 0.0
    %561 = vmatpush1.msra.mxu0 0.0
    %562 = vmatprep.subr.mxu0 0.0
    %563 = vmatpush1.msra.mxu0 0.0
    %564 = vmatprep.subr.mxu0 0.0
    %565 = vmatpush1.msra.mxu0 0.0
    %566 = vmatprep.subr.mxu0 0.0
    %567 = vmatpush1.msra.mxu0 0.0
    %568 = vmatprep.subr.mxu0 0.0
    %569 = vmatpush1.msra.mxu0 0.0
    %570 = vmatprep.subr.mxu0 0.0
    %571 = vmatpush1.msra.mxu0 0.0
    %572 = vmatprep.subr.mxu0 0.0
    %573 = vmatpush1.msra.mxu0 0.0
    %574 = vmatprep.subr.mxu0 0.0
    %575 = vmatpush1.msra.mxu0 0.0
    %576 = vmatprep.subr.mxu0 0.0
    %577 = vmatpush1.msra.mxu0 0.0
    %578 = vmatprep.subr.mxu0 0.0
    %579 = vmatpush1.msra.mxu0 0.0
    %580 = vmatprep.subr.mxu0 0.0
    %581 = vmatpush1.msra.mxu0 0.0
    %582 = vmatprep.subr.mxu0 0.0
    %583 = vmatpush1.msra.mxu0 0.0
    %584 = vmatprep.subr.mxu0 0.0
    %585 = vmatpush1.msra.mxu0 0.0
    %586 = vmatprep.subr.mxu0 0.0
    %587 = vmatpush1.msra.mxu0 0.0
    %588 = vmatprep.subr.mxu0 0.0
    %589 = vmatpush1.msra.mxu0 0.0
    %590 = vmatprep.subr.mxu0 0.0
    %591 = vmatpush1.msra.mxu0 0.0
    %592 = vmatprep.subr.mxu0 0.0
    %593 = vmatpush1.msra.mxu0 0.0
    %594 = vmatprep.subr.mxu0 0.0
    %595 = vmatpush1.msra.mxu0 0.0
    %596 = vmatprep.subr.mxu0 0.0
    %597 = vmatpush1.msra.mxu0 0.0
    %598 = vmatprep.subr.mxu0 0.0
    %599 = vmatpush1.msra.mxu0 0.0
    %600 = vmatprep.subr.mxu0 0.0
    %601 = vmatpush1.msra.mxu0 0.0
    %602 = vmatprep.subr.mxu0 0.0
    %603 = vmatpush1.msra.mxu0 0.0
    %604 = vmatprep.mubr.f32.mxu0 0.0
    %605 = vmatmul.mubr.f32.gmra.mrb[0].mxu0 %v538
    %v606 = vpop.f32.mrb[0].mxu0
    %v607 = vadd.f32 0.0, %v606
    %v608 = vpop.f32.mrb[0].mxu0
    %609 = vdwg.mxu0
    %v611 = vrot.slane %v607, 3
    %v613 = vadd.f32 %v62, %v611
    %v614 = vxor.u32 %v613, 2147483648
    %v615 = vmul.f32 %v614, 1.442695
    %v616 = vpow.pop %v615
    %v617 = vadd.f32 %v616, 1.0
    %v618 = vrcp.pop %v617
    %v619 = vmul.f32 1.0, %v618
    %v620 = vtanh.pop %v613
    %v622 = vrot.slane %v522, 7
    %v624 = vmul.f32 %v619, %v622
    %626 = vrot.lane.b32.xlu0 %v620, 32
    %v627 = vpop.permute.xlu0 %626
    %v629 = vmul.f32 %v619, %v627
    %631 = vrot.lane.b32.xlu0 %v629, 32
    %v632 = vpop.permute.xlu0 %631
    %v634 = vadd.f32 %v624, %v632
    %v635 = vtanh.pop %v634
    %637 = vrot.lane.b32.xlu0 %v635, 32
    %v638 = vpop.permute.xlu0 %637
    %v640 = vmul.f32 %v619, %v638
    %642 = vrot.lane.b32.xlu0 %v640, 64
    %v643 = vpop.permute.xlu0 %642
    %vm645 = vcmask 259077
    %646 = vst.msk [vmem:[#allocation2] sm:$0x20] %vm645, %v643
    %v647 = vrot.slane %v640, 5
    %648 = vrot.lane.b32.xlu0 %v647, 64
    %v649 = vpop.permute.xlu0 %648
    %v650 = vsel %vm87, %v649, 0
    %652 = vmatprep.subr.mxu0 0.0
    %653 = vmatpush1.msra.mxu0 %v28
    %654 = vmatprep.subr.mxu0 0.0
    %655 = vmatpush1.msra.mxu0 %v29
    %656 = vmatprep.subr.mxu0 0.0
    %657 = vmatpush1.msra.mxu0 %v30
    %658 = vmatprep.subr.mxu0 0.0
    %659 = vmatpush1.msra.mxu0 %v31
    %660 = vmatprep.subr.mxu0 0.0
    %661 = vmatpush1.msra.mxu0 0.0
    %662 = vmatprep.subr.mxu0 0.0
    %663 = vmatpush1.msra.mxu0 0.0
    %664 = vmatprep.subr.mxu0 0.0
    %665 = vmatpush1.msra.mxu0 0.0
    %666 = vmatprep.subr.mxu0 0.0
    %667 = vmatpush1.msra.mxu0 0.0
    %668 = vmatprep.subr.mxu0 0.0
    %669 = vmatpush1.msra.mxu0 0.0
    %670 = vmatprep.subr.mxu0 0.0
    %671 = vmatpush1.msra.mxu0 0.0
    %672 = vmatprep.subr.mxu0 0.0
    %673 = vmatpush1.msra.mxu0 0.0
    %674 = vmatprep.subr.mxu0 0.0
    %675 = vmatpush1.msra.mxu0 0.0
    %676 = vmatprep.subr.mxu0 0.0
    %677 = vmatpush1.msra.mxu0 0.0
    %678 = vmatprep.subr.mxu0 0.0
    %679 = vmatpush1.msra.mxu0 0.0
    %680 = vmatprep.subr.mxu0 0.0
    %681 = vmatpush1.msra.mxu0 0.0
    %682 = vmatprep.subr.mxu0 0.0
    %683 = vmatpush1.msra.mxu0 0.0
    %684 = vmatprep.subr.mxu0 0.0
    %685 = vmatpush1.msra.mxu0 0.0
    %686 = vmatprep.subr.mxu0 0.0
    %687 = vmatpush1.msra.mxu0 0.0
    %688 = vmatprep.subr.mxu0 0.0
    %689 = vmatpush1.msra.mxu0 0.0
    %690 = vmatprep.subr.mxu0 0.0
    %691 = vmatpush1.msra.mxu0 0.0
    %692 = vmatprep.subr.mxu0 0.0
    %693 = vmatpush1.msra.mxu0 0.0
    %694 = vmatprep.subr.mxu0 0.0
    %695 = vmatpush1.msra.mxu0 0.0
    %696 = vmatprep.subr.mxu0 0.0
    %697 = vmatpush1.msra.mxu0 0.0
    %698 = vmatprep.subr.mxu0 0.0
    %699 = vmatpush1.msra.mxu0 0.0
    %700 = vmatprep.subr.mxu0 0.0
    %701 = vmatpush1.msra.mxu0 0.0
    %702 = vmatprep.subr.mxu0 0.0
    %703 = vmatpush1.msra.mxu0 0.0
    %704 = vmatprep.subr.mxu0 0.0
    %705 = vmatpush1.msra.mxu0 0.0
    %706 = vmatprep.subr.mxu0 0.0
    %707 = vmatpush1.msra.mxu0 0.0
    %708 = vmatprep.subr.mxu0 0.0
    %709 = vmatpush1.msra.mxu0 0.0
    %710 = vmatprep.subr.mxu0 0.0
    %711 = vmatpush1.msra.mxu0 0.0
    %712 = vmatprep.subr.mxu0 0.0
    %713 = vmatpush1.msra.mxu0 0.0
    %714 = vmatprep.subr.mxu0 0.0
    %715 = vmatpush1.msra.mxu0 0.0
    %716 = vmatprep.mubr.f32.mxu0 0.0
    %717 = vmatmul.mubr.f32.gmra.mrb[0].mxu0 %v650
    %v718 = vpop.f32.mrb[0].mxu0
    %v719 = vadd.f32 0.0, %v718
    %v720 = vpop.f32.mrb[0].mxu0
    %721 = vdwg.mxu0
    %v723 = vrot.slane %v719, 2
    %v725 = vadd.f32 %v62, %v723
    %v726 = vxor.u32 %v725, 2147483648
    %v727 = vmul.f32 %v726, 1.442695
    %v728 = vpow.pop %v727
    %v729 = vadd.f32 %v728, 1.0
    %v730 = vrcp.pop %v729
    %v731 = vmul.f32 1.0, %v730
    %v732 = vtanh.pop %v725
    %v734 = vrot.slane %v634, 7
    %v736 = vmul.f32 %v731, %v734
    %738 = vrot.lane.b32.xlu0 %v732, 32
    %v739 = vpop.permute.xlu0 %738
    %v741 = vmul.f32 %v731, %v739
    %743 = vrot.lane.b32.xlu0 %v741, 32
    %v744 = vpop.permute.xlu0 %743
    %v746 = vadd.f32 %v736, %v744
    %v747 = vtanh.pop %v746
    %749 = vrot.lane.b32.xlu0 %v747, 32
    %v750 = vpop.permute.xlu0 %749
    %v752 = vmul.f32 %v731, %v750
    %754 = vrot.lane.b32.xlu0 %v752, 64
    %v755 = vpop.permute.xlu0 %754
    %vm757 = vcmask 260102
    %758 = vst.msk [vmem:[#allocation2] sm:$0x40] %vm757, %v755
    %v759 = vrot.slane %v752, 6
    %760 = vrot.lane.b32.xlu0 %v759, 64
    %v761 = vpop.permute.xlu0 %760
    %v762 = vsel %vm87, %v761, 0
    %764 = vmatprep.subr.mxu0 0.0
    %765 = vmatpush1.msra.mxu0 %v28
    %766 = vmatprep.subr.mxu0 0.0
    %767 = vmatpush1.msra.mxu0 %v29
    %768 = vmatprep.subr.mxu0 0.0
    %769 = vmatpush1.msra.mxu0 %v30
    %770 = vmatprep.subr.mxu0 0.0
    %771 = vmatpush1.msra.mxu0 %v31
    %772 = vmatprep.subr.mxu0 0.0
    %773 = vmatpush1.msra.mxu0 0.0
    %774 = vmatprep.subr.mxu0 0.0
    %775 = vmatpush1.msra.mxu0 0.0
    %776 = vmatprep.subr.mxu0 0.0
    %777 = vmatpush1.msra.mxu0 0.0
    %778 = vmatprep.subr.mxu0 0.0
    %779 = vmatpush1.msra.mxu0 0.0
    %780 = vmatprep.subr.mxu0 0.0
    %781 = vmatpush1.msra.mxu0 0.0
    %782 = vmatprep.subr.mxu0 0.0
    %783 = vmatpush1.msra.mxu0 0.0
    %784 = vmatprep.subr.mxu0 0.0
    %785 = vmatpush1.msra.mxu0 0.0
    %786 = vmatprep.subr.mxu0 0.0
    %787 = vmatpush1.msra.mxu0 0.0
    %788 = vmatprep.subr.mxu0 0.0
    %789 = vmatpush1.msra.mxu0 0.0
    %790 = vmatprep.subr.mxu0 0.0
    %791 = vmatpush1.msra.mxu0 0.0
    %792 = vmatprep.subr.mxu0 0.0
    %793 = vmatpush1.msra.mxu0 0.0
    %794 = vmatprep.subr.mxu0 0.0
    %795 = vmatpush1.msra.mxu0 0.0
    %796 = vmatprep.subr.mxu0 0.0
    %797 = vmatpush1.msra.mxu0 0.0
    %798 = vmatprep.subr.mxu0 0.0
    %799 = vmatpush1.msra.mxu0 0.0
    %800 = vmatprep.subr.mxu0 0.0
    %801 = vmatpush1.msra.mxu0 0.0
    %802 = vmatprep.subr.mxu0 0.0
    %803 = vmatpush1.msra.mxu0 0.0
    %804 = vmatprep.subr.mxu0 0.0
    %805 = vmatpush1.msra.mxu0 0.0
    %806 = vmatprep.subr.mxu0 0.0
    %807 = vmatpush1.msra.mxu0 0.0
    %808 = vmatprep.subr.mxu0 0.0
    %809 = vmatpush1.msra.mxu0 0.0
    %810 = vmatprep.subr.mxu0 0.0
    %811 = vmatpush1.msra.mxu0 0.0
    %812 = vmatprep.subr.mxu0 0.0
    %813 = vmatpush1.msra.mxu0 0.0
    %814 = vmatprep.subr.mxu0 0.0
    %815 = vmatpush1.msra.mxu0 0.0
    %816 = vmatprep.subr.mxu0 0.0
    %817 = vmatpush1.msra.mxu0 0.0
    %818 = vmatprep.subr.mxu0 0.0
    %819 = vmatpush1.msra.mxu0 0.0
    %820 = vmatprep.subr.mxu0 0.0
    %821 = vmatpush1.msra.mxu0 0.0
    %822 = vmatprep.subr.mxu0 0.0
    %823 = vmatpush1.msra.mxu0 0.0
    %824 = vmatprep.subr.mxu0 0.0
    %825 = vmatpush1.msra.mxu0 0.0
    %826 = vmatprep.subr.mxu0 0.0
    %827 = vmatpush1.msra.mxu0 0.0
    %828 = vmatprep.mubr.f32.mxu0 0.0
    %829 = vmatmul.mubr.f32.gmra.mrb[0].mxu0 %v762
    %v830 = vpop.f32.mrb[0].mxu0
    %v831 = vadd.f32 0.0, %v830
    %v832 = vpop.f32.mrb[0].mxu0
    %833 = vdwg.mxu0
    %v835 = vrot.slane %v831, 1
    %v837 = vadd.f32 %v62, %v835
    %v838 = vxor.u32 %v837, 2147483648
    %v839 = vmul.f32 %v838, 1.442695
    %v840 = vpow.pop %v839
    %v841 = vadd.f32 %v840, 1.0
    %v842 = vrcp.pop %v841
    %v843 = vmul.f32 1.0, %v842
    %v844 = vtanh.pop %v837
    %v846 = vrot.slane %v746, 7
    %v848 = vmul.f32 %v843, %v846
    %850 = vrot.lane.b32.xlu0 %v844, 32
    %v851 = vpop.permute.xlu0 %850
    %v853 = vmul.f32 %v843, %v851
    %855 = vrot.lane.b32.xlu0 %v853, 32
    %v856 = vpop.permute.xlu0 %855
    %v858 = vadd.f32 %v848, %v856
    %v859 = vtanh.pop %v858
    %861 = vrot.lane.b32.xlu0 %v859, 32
    %v862 = vpop.permute.xlu0 %861
    %v864 = vmul.f32 %v843, %v862
    %866 = vrot.lane.b32.xlu0 %v864, 64
    %v867 = vpop.permute.xlu0 %866
    %vm869 = vcmask 261127
    %870 = vst.msk [vmem:[#allocation2] sm:$0x80] %vm869, %v867
    %v871 = vld [vmem:[#allocation2] sm:$0xff]
    %v872 = vlaneseq
    %v873 = vshrl.u32 %v872, 7
    %v874 = vsub.s32 0, %v873
    %v875 = vrot.slane %v36, %v874
    %v877 = vsel %vm87, %v871, 0
    %879 = vmatprep.subr.mxu0 0.0
    %880 = vmatpush1.msra.mxu0 %v32
    %881 = vmatprep.subr.mxu0 0.0
    %882 = vmatpush1.msra.mxu0 %v33
    %883 = vmatprep.subr.mxu0 0.0
    %884 = vmatpush1.msra.mxu0 %v34
    %885 = vmatprep.subr.mxu0 0.0
    %886 = vmatpush1.msra.mxu0 %v35
    %887 = vmatprep.subr.mxu0 0.0
    %888 = vmatpush1.msra.mxu0 0.0
    %889 = vmatprep.subr.mxu0 0.0
    %890 = vmatpush1.msra.mxu0 0.0
    %891 = vmatprep.subr.mxu0 0.0
    %892 = vmatpush1.msra.mxu0 0.0
    %893 = vmatprep.subr.mxu0 0.0
    %894 = vmatpush1.msra.mxu0 0.0
    %895 = vmatprep.subr.mxu0 0.0
    %896 = vmatpush1.msra.mxu0 0.0
    %897 = vmatprep.subr.mxu0 0.0
    %898 = vmatpush1.msra.mxu0 0.0
    %899 = vmatprep.subr.mxu0 0.0
    %900 = vmatpush1.msra.mxu0 0.0
    %901 = vmatprep.subr.mxu0 0.0
    %902 = vmatpush1.msra.mxu0 0.0
    %903 = vmatprep.subr.mxu0 0.0
    %904 = vmatpush1.msra.mxu0 0.0
    %905 = vmatprep.subr.mxu0 0.0
    %906 = vmatpush1.msra.mxu0 0.0
    %907 = vmatprep.subr.mxu0 0.0
    %908 = vmatpush1.msra.mxu0 0.0
    %909 = vmatprep.subr.mxu0 0.0
    %910 = vmatpush1.msra.mxu0 0.0
    %911 = vmatprep.subr.mxu0 0.0
    %912 = vmatpush1.msra.mxu0 0.0
    %913 = vmatprep.subr.mxu0 0.0
    %914 = vmatpush1.msra.mxu0 0.0
    %915 = vmatprep.subr.mxu0 0.0
    %916 = vmatpush1.msra.mxu0 0.0
    %917 = vmatprep.subr.mxu0 0.0
    %918 = vmatpush1.msra.mxu0 0.0
    %919 = vmatprep.subr.mxu0 0.0
    %920 = vmatpush1.msra.mxu0 0.0
    %921 = vmatprep.subr.mxu0 0.0
    %922 = vmatpush1.msra.mxu0 0.0
    %923 = vmatprep.subr.mxu0 0.0
    %924 = vmatpush1.msra.mxu0 0.0
    %925 = vmatprep.subr.mxu0 0.0
    %926 = vmatpush1.msra.mxu0 0.0
    %927 = vmatprep.subr.mxu0 0.0
    %928 = vmatpush1.msra.mxu0 0.0
    %929 = vmatprep.subr.mxu0 0.0
    %930 = vmatpush1.msra.mxu0 0.0
    %931 = vmatprep.subr.mxu0 0.0
    %932 = vmatpush1.msra.mxu0 0.0
    %933 = vmatprep.subr.mxu0 0.0
    %934 = vmatpush1.msra.mxu0 0.0
    %935 = vmatprep.subr.mxu0 0.0
    %936 = vmatpush1.msra.mxu0 0.0
    %937 = vmatprep.subr.mxu0 0.0
    %938 = vmatpush1.msra.mxu0 0.0
    %939 = vmatprep.subr.mxu0 0.0
    %940 = vmatpush1.msra.mxu0 0.0
    %941 = vmatprep.subr.mxu0 0.0
    %942 = vmatpush1.msra.mxu0 0.0
    %943 = vmatprep.mubr.f32.mxu0 0.0
    %944 = vmatmul.mubr.f32.gmra.mrb[0].mxu0 %v877
    %v945 = vpop.f32.mrb[0].mxu0
    %v946 = vadd.f32 %v875, %v945
    %v947 = vpop.f32.mrb[0].mxu0
    %948 = vdwg.mxu0
    %949 = vst [vmem:[%s2] sm:$0xff] %v946
    // Predicated region
    $region14: #{lstm_predictor_forward.1} parent=1 // pred_check
      _
    $region15: #{lstm_predictor_forward.1} parent=1 // pred_check_branch
      %951 = sbr.rel (0) target = $region17
    $region16: #{lstm_predictor_forward.1} parent=1 // pred_region
      _
    $region17: #{lstm_predictor_forward.1} parent=1 // pred_fallthru
      _
    // Predicated region
    $region18: #{lstm_predictor_forward.1} parent=1 // pred_check
      _
    $region19: #{lstm_predictor_forward.1} parent=1 // pred_check_branch
      %953 = sbr.rel (0) target = $region21
    $region20: #{lstm_predictor_forward.1} parent=1 // pred_region
      _
    $region21: #{lstm_predictor_forward.1} parent=1 // pred_fallthru
      _
    %954 = vsyncpa [#allocation4], 1

</llo_original>
